<compile_context>
chip_gen: v7x
topology: tpu7x:2x2x1
jax: 0.10.0
libtpu: 0.0.40
codegen_flags: <defaults>
</compile_context>

<pallas_src>
import jax
import jax.numpy as jnp
from jax import lax
from jax.experimental import pallas as pl
from jax.experimental.pallas import tpu as pltpu

# ----- "module __init__" constants (deterministic, no checkpoint) -----------
EOS_COEF = 0.1                      # -> empty_weight = [1.0, eos_coef]
SALIENCY_MARGIN = 1.0
TEMPERATURE = 0.07                  # self.temperature (set outside __init__ in lighthouse)
FOREGROUND_LABEL = 0
BACKGROUND_LABEL = 1
SPAN_LOSS_TYPE = "l1"               # TODO(synk): the 'ce' span_loss_type branch is not implemented.
EPS = 1e-6
LANES = 128                         # slab width / packed loss-row width

# ----- slab row layout (header rows 0..15, then D img rows, then D txt rows) -
ROW_LOGIT_FG = 0                    # pred_logits[..., 0]        over lanes b*Q+q
ROW_LOGIT_BG = 1                    # pred_logits[..., 1]
ROW_MATCH = 2                       # matched-query mask (also moment-span validity; identity matcher)
ROW_MSRC_C, ROW_MSRC_W = 3, 4       # matched moment src spans (center, width)
ROW_MTGT_C, ROW_MTGT_W = 5, 6       # matched moment tgt spans
ROW_ESRC_C, ROW_ESRC_W = 7, 8       # matched event src spans  over lanes b*QE+j
ROW_ETGT_C, ROW_ETGT_W = 9, 10      # matched event tgt spans
ROW_EVALID = 11                     # event validity mask
ROW_SAL_POS, ROW_SAL_NEG = 12, 13   # gathered saliency scores  over lanes b*P+p
ROW_SAL_VAL = 14                    # saliency validity (all-zero when labels absent)
ROW_HDR = 16                        # img block at [16, 16+D), txt block at [16+D, 16+2D)

_VMEM = pl.BlockSpec(memory_space=pltpu.MemorySpace.VMEM)


# =============================== fused Pallas kernel =========================
def _make_kernel(B, Q, D):
    """Kernel closure over the static problem sizes (B, Q, D)."""
    BQ = B * Q
    inv_bq = 1.0 / float(BQ)
    inv_temp = 1.0 / TEMPERATURE
    row_img = ROW_HDR
    row_txt = ROW_HDR + D

    def kernel(slab_ref, out_ref):
        f32 = jnp.float32
        lane = lax.broadcasted_iota(jnp.int32, (1, LANES), 1)   # hoisted once, reused by all masks

        # ---- labels: weighted 2-class cross-entropy over the B*Q query slots ----
        l_fg = slab_ref[ROW_LOGIT_FG:ROW_LOGIT_FG + 1, :]
        l_bg = slab_ref[ROW_LOGIT_BG:ROW_LOGIT_BG + 1, :]
        match = slab_ref[ROW_MATCH:ROW_MATCH + 1, :]            # 1.0 where query is matched
        q_valid = lane < BQ
        m = jnp.maximum(l_fg, l_bg)
        lse = jnp.log(jnp.exp(l_fg - m) + jnp.exp(l_bg - m)) + m
        tgt_logit = jnp.where(match > 0.5, l_fg, l_bg)
        w = jnp.where(match > 0.5, 1.0, EOS_COEF)
        ce = jnp.where(q_valid, w * (lse - tgt_logit), 0.0)
        loss_label = jnp.sum(ce, keepdims=True) * inv_bq        # (1,1)

        # ---- masked span L1 + GIoU (exact divisions; eps-guarded denominators) ----
        def span_losses(sc, sw, tc, tw, valid):
            cnt = jnp.maximum(jnp.sum(valid, keepdims=True), 1.0)          # (1,1)
            l1 = jnp.sum(valid * (jnp.abs(sc - tc) + jnp.abs(sw - tw)),
                         keepdims=True) / (2.0 * cnt)
            s1, s2 = sc - 0.5 * sw, sc + 0.5 * sw
            t1, t2 = tc - 0.5 * tw, tc + 0.5 * tw
            inter = jnp.maximum(jnp.minimum(s2, t2) - jnp.maximum(s1, t1), 0.0)
            union = (s2 - s1) + (t2 - t1) - inter
            iou = inter / jnp.maximum(union, EPS)
            enclose = jnp.maximum(s2, t2) - jnp.minimum(s1, t1)
            giou = iou - (enclose - union) / jnp.maximum(enclose, EPS)
            lg = jnp.sum(valid * (1.0 - giou), keepdims=True) / cnt
            return l1, lg

        loss_span, loss_giou = span_losses(
            slab_ref[ROW_MSRC_C:ROW_MSRC_C + 1, :], slab_ref[ROW_MSRC_W:ROW_MSRC_W + 1, :],
            slab_ref[ROW_MTGT_C:ROW_MTGT_C + 1, :], slab_ref[ROW_MTGT_W:ROW_MTGT_W + 1, :],
            match)                                              # identity matcher: match mask == span validity
        loss_espan, loss_egiou = span_losses(
            slab_ref[ROW_ESRC_C:ROW_ESRC_C + 1, :], slab_ref[ROW_ESRC_W:ROW_ESRC_W + 1, :],
            slab_ref[ROW_ETGT_C:ROW_ETGT_C + 1, :], slab_ref[ROW_ETGT_W:ROW_ETGT_W + 1, :],
            slab_ref[ROW_EVALID:ROW_EVALID + 1, :])

        # ---- saliency hinge: sum(clamp(margin + neg - pos, 0)) / (B*P) * 2 ----
        pos = slab_ref[ROW_SAL_POS:ROW_SAL_POS + 1, :]
        neg = slab_ref[ROW_SAL_NEG:ROW_SAL_NEG + 1, :]
        sval = slab_ref[ROW_SAL_VAL:ROW_SAL_VAL + 1, :]
        hinge = sval * jnp.maximum(SALIENCY_MARGIN + neg - pos, 0.0)
        sal_cnt = jnp.maximum(jnp.sum(sval, keepdims=True), 1.0)
        loss_sal = jnp.sum(hinge, keepdims=True) * 2.0 / sal_cnt            # 0 when labels absent

        # ---- contrastive align: s[b,q] = <img[b,q], sum_n txt[b,n]> / T ----
        img = slab_ref[row_img:row_img + D, :]                  # (D,128): lane b*Q+q, sublane d
        txt = slab_ref[row_txt:row_txt + D, :]                  # txt_sum[b,d] tiled over q (wrapper-side)
        s = jnp.sum(img * txt, axis=0, keepdims=True) * inv_temp            # (1,128), query-lane layout
        nce = jnp.zeros((1, 1), f32)
        for b in range(B):                                      # static unroll, B is tiny
            sel = (lane >= b * Q) & (lane < (b + 1) * Q)
            mx = jnp.max(jnp.where(sel, s, -1e30), keepdims=True)
            neg_term = jnp.log(jnp.sum(jnp.where(sel, jnp.exp(s - mx), 0.0),
                                       keepdims=True)) + mx
            pos_term = jnp.sum(jnp.where(sel, s * match, 0.0), keepdims=True)
            num_pos = jnp.maximum(jnp.sum(jnp.where(sel, match, 0.0), keepdims=True), 1.0)
            nce = nce + (neg_term - pos_term / num_pos)
        loss_nce = nce * (1.0 / float(B))

        # ---- single lane-dense packed output row (one unmasked full-width store) ----
        vals = (loss_span, loss_giou, loss_label, loss_sal, loss_nce, loss_espan, loss_egiou)
        out = jnp.zeros((1, LANES), f32)
        for k, v in enumerate(vals):
            out = out + jnp.where(lane == k, v, 0.0)
        out_ref[...] = out

    return kernel


# ============================ pallas_call wrapper ============================
def _fused_losses_call(slab, *, B, Q, D):
    nrows = slab.shape[0]
    kernel = _make_kernel(B, Q, D)
    bytes_accessed = 4 * (slab.size + LANES)
    flops = int(40 * nrows * LANES)
    transcendentals = int(8 * LANES)
    return pl.pallas_call(
        kernel,
        out_shape=jax.ShapeDtypeStruct((1, LANES), jnp.float32),
        in_specs=[_VMEM],
        out_specs=_VMEM,
        cost_estimate=pl.CostEstimate(flops=flops,
                                      transcendentals=transcendentals,
                                      bytes_accessed=bytes_accessed),
    )(slab)


# ============================ jitted glue (JAX) ==============================
@jax.jit
def _forward_core(pred_logits, pred_spans, pred_event_spans, saliency_scores,
                  proj_queries, proj_txt_mem, tgt_spans, evt_spans,
                  counts_m, counts_e, sal_pos_idx, sal_neg_idx, sal_valid):
    f32 = jnp.float32
    B, Q, _ = pred_logits.shape
    QE = pred_event_spans.shape[1]
    D = proj_queries.shape[2]
    P = sal_pos_idx.shape[1]
    BQ, BQE, BP = B * Q, B * QE, B * P
    # Demo-scale assumption: each flattened field fits in one 128-lane row.
    assert BQ <= LANES and BQE <= LANES and BP <= LANES

    # Identity matcher masks (vectorized, no per-batch loops).
    # TODO(synk): Hungarian matching (self.matcher / self.event_matcher) is an injected external
    # module in the PyTorch code; replaced here by a deterministic identity assignment.
    match_mask = (jnp.arange(Q)[None, :] < counts_m[:, None]).astype(f32)   # (B, Q)
    e_valid = (jnp.arange(QE)[None, :] < counts_e[:, None]).astype(f32)     # (B, QE)

    # Saliency gathers (vectorized take_along_axis).
    sal_pos = jnp.take_along_axis(saliency_scores, sal_pos_idx, axis=1)     # (B, P)
    sal_neg = jnp.take_along_axis(saliency_scores, sal_neg_idx, axis=1)

    # Contrastive blocks: img -> (D, B*Q); txt_sum tiled over queries -> (D, B*Q).
    txt_sum = jnp.sum(proj_txt_mem, axis=1)                                 # (B, D)
    img_blk = jnp.transpose(proj_queries, (2, 0, 1)).reshape(D, BQ)
    txt_blk = jnp.broadcast_to(jnp.transpose(txt_sum)[:, :, None], (D, B, Q)).reshape(D, BQ)

    # ---- assemble the single lane-dense slab (one HBM->VMEM DMA) ----
    nrows = -(-(ROW_HDR + 2 * D) // 8) * 8
    slab = jnp.zeros((nrows, LANES), f32)

    def put(s, r, v):
        v = v.reshape(-1).astype(f32)
        return s.at[r, :v.shape[0]].set(v)

    slab = put(slab, ROW_LOGIT_FG, pred_logits[..., 0])
    slab = put(slab, ROW_LOGIT_BG, pred_logits[..., 1])
    slab = put(slab, ROW_MATCH, match_mask)
    slab = put(slab, ROW_MSRC_C, pred_spans[..., 0])
    slab = put(slab, ROW_MSRC_W, pred_spans[..., 1])
    slab = put(slab, ROW_MTGT_C, tgt_spans[..., 0])
    slab = put(slab, ROW_MTGT_W, tgt_spans[..., 1])
    slab = put(slab, ROW_ESRC_C, pred_event_spans[..., 0])
    slab = put(slab, ROW_ESRC_W, pred_event_spans[..., 1])
    slab = put(slab, ROW_ETGT_C, evt_spans[..., 0])
    slab = put(slab, ROW_ETGT_W, evt_spans[..., 1])
    slab = put(slab, ROW_EVALID, e_valid)
    slab = put(slab, ROW_SAL_POS, sal_pos)
    slab = put(slab, ROW_SAL_NEG, sal_neg)
    slab = put(slab, ROW_SAL_VAL, sal_valid)
    slab = slab.at[ROW_HDR:ROW_HDR + D, :BQ].set(img_blk.astype(f32))
    slab = slab.at[ROW_HDR + D:ROW_HDR + 2 * D, :BQ].set(txt_blk.astype(f32))

    out = _fused_losses_call(slab, B=B, Q=Q, D=D)

    losses = {
        "loss_span": out[0, 0],
        "loss_giou": out[0, 1],
        "loss_label": out[0, 2],
        "loss_saliency": out[0, 3],
        "loss_contrastive_align": out[0, 4],
        "loss_event_span": out[0, 5],
        "loss_event_giou": out[0, 6],
    }

    # class_error is logging-only; computed in the jitted glue (fused by XLA).
    preds_fg = (jnp.argmax(pred_logits, axis=-1) == FOREGROUND_LABEL).astype(f32)
    n_match = jnp.maximum(jnp.sum(match_mask), 1.0)
    acc = 100.0 * jnp.sum(preds_fg * match_mask) / n_match
    losses["class_error"] = 100.0 - acc
    return losses


# ===================== outer wrapper (eager ragged padding) ==================
def set_criterion_forward(outputs, targets):
    pred_logits = outputs["pred_logits"]
    B, Q, _ = pred_logits.shape
    QE = outputs["pred_event_spans"].shape[1]

    # Pad ragged per-batch targets to static shapes OUTSIDE jit so that varying
    # target / event counts never retrace the jitted core or recompile the kernel.
    span_list = [t["spans"] for t in targets["span_labels"]]
    counts_m = jnp.array([s.shape[0] for s in span_list], jnp.int32)
    tgt_spans = jnp.zeros((B, Q, 2), jnp.float32)
    for b, s in enumerate(span_list):
        tgt_spans = tgt_spans.at[b, : s.shape[0]].set(s.astype(jnp.float32))

    evt_list = outputs["pseudo_event_spans"]
    counts_e = jnp.array([e.shape[0] for e in evt_list], jnp.int32)
    evt_spans = jnp.zeros((B, QE, 2), jnp.float32)
    for b, e in enumerate(evt_list):
        evt_spans = evt_spans.at[b, : e.shape[0]].set(e.astype(jnp.float32))

    has_sal = "saliency_pos_labels" in targets
    if has_sal:
        pos_idx = targets["saliency_pos_labels"].astype(jnp.int32)
        neg_idx = targets["saliency_neg_labels"].astype(jnp.int32)
    else:
        pos_idx = jnp.zeros((B, 1), jnp.int32)
        neg_idx = jnp.zeros((B, 1), jnp.int32)
    sal_valid = jnp.full(pos_idx.shape, 1.0 if has_sal else 0.0, jnp.float32)

    # TODO(synk): no 'aux_outputs' in the synthetic inputs, so the aux-layer loop is a no-op here.
    return _forward_core(pred_logits, outputs["pred_spans"], outputs["pred_event_spans"],
                         outputs["saliency_scores"], outputs["proj_queries"],
                         outputs["proj_txt_mem"], tgt_spans, evt_spans,
                         counts_m, counts_e, pos_idx, neg_idx, sal_valid)


# ================================== main =====================================
def _make_spans(key, shape):
    u = jax.random.uniform(key, shape + (2,), jnp.float32)
    cx = 0.25 + 0.5 * u[..., 0]
    w = 0.1 + 0.2 * u[..., 1]
    return jnp.stack([cx, w], axis=-1)


if __name__ == "__main__":
    B, Q, D, NTXT, L, P = 2, 8, 32, 8, 16, 2
    QE = 6
    n_tgt = [3, 2]          # ground-truth moments per batch element
    n_evt = [3, 2]          # pseudo event spans per batch element

    keys = jax.random.split(jax.random.PRNGKey(0), 12)

    pred_logits = jax.random.normal(keys[0], (B, Q, 2), jnp.float32)
    pred_spans = _make_spans(keys[1], (B, Q))
    pred_event_spans = _make_spans(keys[2], (B, QE))
    saliency_scores = jax.random.normal(keys[3], (B, L), jnp.float32)

    proj_queries = jax.random.normal(keys[4], (B, Q, D), jnp.float32)
    proj_queries = proj_queries / jnp.linalg.norm(proj_queries, axis=-1, keepdims=True)
    proj_txt_mem = jax.random.normal(keys[5], (B, NTXT, D), jnp.float32)
    proj_txt_mem = proj_txt_mem / jnp.linalg.norm(proj_txt_mem, axis=-1, keepdims=True)

    pseudo_event_spans = [
        _make_spans(keys[6], (n_evt[0],)),
        _make_spans(keys[7], (n_evt[1],)),
    ]

    outputs = {
        "pred_logits": pred_logits,
        "pred_spans": pred_spans,
        "pred_event_spans": pred_event_spans,
        "pseudo_event_spans": pseudo_event_spans,
        "saliency_scores": saliency_scores,
        "proj_queries": proj_queries,
        "proj_txt_mem": proj_txt_mem,
    }

    targets = {
        "span_labels": [
            {"spans": _make_spans(keys[8], (n_tgt[0],))},
            {"spans": _make_spans(keys[9], (n_tgt[1],))},
        ],
        "saliency_pos_labels": jnp.array([[0, 1], [2, 3]], jnp.int32),
        "saliency_neg_labels": jnp.array([[8, 9], [10, 11]], jnp.int32),
    }

    losses = set_criterion_forward(outputs, targets)
    for v in losses.values():
        if isinstance(v, jax.Array):
            jax.block_until_ready(v)
    print("KERNEL_OK")
</pallas_src>

<mosaic_0001>
module attributes {stable_mosaic.version = 11 : i64} {
  func.func @kernel(%arg0: memref<80x128xf32, #tpu.memory_space<vmem>>, %arg1: memref<1x128xf32, #tpu.memory_space<vmem>>) attributes {dimension_semantics = [], scalar_prefetch = 0 : i64, scratch_operands = 0 : i64, tpu.core_type = #tpu.core_type<tc>} {
    %0 = tpu.iota {dimensions = array<i32: 1>} : vector<1x128xi32>
    %c0 = arith.constant 0 : index
    %c0_0 = arith.constant 0 : index
    %1 = vector.load %arg0[%c0, %c0_0] : memref<80x128xf32, #tpu.memory_space<vmem>>, vector<1x128xf32>
    %c1 = arith.constant 1 : index
    %c0_1 = arith.constant 0 : index
    %2 = vector.load %arg0[%c1, %c0_1] : memref<80x128xf32, #tpu.memory_space<vmem>>, vector<1x128xf32>
    %c2 = arith.constant 2 : index
    %c0_2 = arith.constant 0 : index
    %3 = vector.load %arg0[%c2, %c0_2] : memref<80x128xf32, #tpu.memory_space<vmem>>, vector<1x128xf32>
    %c16_i32 = arith.constant 16 : i32
    %4 = vector.broadcast %c16_i32 : i32 to vector<1x128xi32>
    %5 = arith.cmpi slt, %0, %4 : vector<1x128xi32>
    %6 = arith.maximumf %1, %2 : vector<1x128xf32>
    %7 = arith.subf %1, %6 : vector<1x128xf32>
    %8 = math.exp %7 : vector<1x128xf32>
    %9 = arith.subf %2, %6 : vector<1x128xf32>
    %10 = math.exp %9 : vector<1x128xf32>
    %11 = arith.addf %8, %10 : vector<1x128xf32>
    %12 = math.log %11 : vector<1x128xf32>
    %13 = arith.addf %12, %6 : vector<1x128xf32>
    %cst = arith.constant 5.000000e-01 : f32
    %14 = vector.broadcast %cst : f32 to vector<1x128xf32>
    %15 = arith.cmpf ogt, %3, %14 : vector<1x128xf32>
    %16 = arith.select %15, %1, %2 : vector<1x128xi1>, vector<1x128xf32>
    %cst_3 = arith.constant 5.000000e-01 : f32
    %17 = vector.broadcast %cst_3 : f32 to vector<1x128xf32>
    %18 = arith.cmpf ogt, %3, %17 : vector<1x128xf32>
    %cst_4 = arith.constant 1.000000e+00 : f32
    %cst_5 = arith.constant 1.000000e-01 : f32
    %19 = vector.broadcast %cst_4 : f32 to vector<1x128xf32>
    %20 = vector.broadcast %cst_5 : f32 to vector<1x128xf32>
    %21 = arith.select %18, %19, %20 : vector<1x128xi1>, vector<1x128xf32>
    %22 = arith.subf %13, %16 : vector<1x128xf32>
    %23 = arith.mulf %21, %22 : vector<1x128xf32>
    %cst_6 = arith.constant 0.000000e+00 : f32
    %24 = vector.broadcast %cst_6 : f32 to vector<1x128xf32>
    %25 = arith.select %5, %23, %24 : vector<1x128xi1>, vector<1x128xf32>
    %26 = vector.shape_cast %25 : vector<1x128xf32> to vector<1x1x128xf32>
    %cst_7 = arith.constant dense<0.000000e+00> : vector<1xf32>
    %27 = vector.multi_reduction <add>, %26, %cst_7 [1, 2] : vector<1x1x128xf32> to vector<1xf32>
    %28 = vector.shape_cast %27 : vector<1xf32> to vector<1x1x1xf32>
    %29 = vector.extract %28[0, 0, 0] : f32 from vector<1x1x1xf32>
    %30 = vector.broadcast %29 : f32 to vector<1x1xf32>
    %cst_8 = arith.constant 6.250000e-02 : f32
    %31 = vector.broadcast %cst_8 : f32 to vector<1x1xf32>
    %32 = arith.mulf %30, %31 : vector<1x1xf32>
    %c3 = arith.constant 3 : index
    %c0_9 = arith.constant 0 : index
    %33 = vector.load %arg0[%c3, %c0_9] : memref<80x128xf32, #tpu.memory_space<vmem>>, vector<1x128xf32>
    %c4 = arith.constant 4 : index
    %c0_10 = arith.constant 0 : index
    %34 = vector.load %arg0[%c4, %c0_10] : memref<80x128xf32, #tpu.memory_space<vmem>>, vector<1x128xf32>
    %c5 = arith.constant 5 : index
    %c0_11 = arith.constant 0 : index
    %35 = vector.load %arg0[%c5, %c0_11] : memref<80x128xf32, #tpu.memory_space<vmem>>, vector<1x128xf32>
    %c6 = arith.constant 6 : index
    %c0_12 = arith.constant 0 : index
    %36 = vector.load %arg0[%c6, %c0_12] : memref<80x128xf32, #tpu.memory_space<vmem>>, vector<1x128xf32>
    %37 = vector.shape_cast %3 : vector<1x128xf32> to vector<1x1x128xf32>
    %cst_13 = arith.constant dense<0.000000e+00> : vector<1xf32>
    %38 = vector.multi_reduction <add>, %37, %cst_13 [1, 2] : vector<1x1x128xf32> to vector<1xf32>
    %39 = vector.shape_cast %38 : vector<1xf32> to vector<1x1x1xf32>
    %40 = vector.extract %39[0, 0, 0] : f32 from vector<1x1x1xf32>
    %41 = vector.broadcast %40 : f32 to vector<1x1xf32>
    %cst_14 = arith.constant 1.000000e+00 : f32
    %42 = vector.broadcast %cst_14 : f32 to vector<1x1xf32>
    %43 = arith.maximumf %41, %42 : vector<1x1xf32>
    %44 = arith.subf %33, %35 : vector<1x128xf32>
    %45 = math.absf %44 : vector<1x128xf32>
    %46 = arith.subf %34, %36 : vector<1x128xf32>
    %47 = math.absf %46 : vector<1x128xf32>
    %48 = arith.addf %45, %47 : vector<1x128xf32>
    %49 = arith.mulf %3, %48 : vector<1x128xf32>
    %50 = vector.shape_cast %49 : vector<1x128xf32> to vector<1x1x128xf32>
    %cst_15 = arith.constant dense<0.000000e+00> : vector<1xf32>
    %51 = vector.multi_reduction <add>, %50, %cst_15 [1, 2] : vector<1x1x128xf32> to vector<1xf32>
    %52 = vector.shape_cast %51 : vector<1xf32> to vector<1x1x1xf32>
    %53 = vector.extract %52[0, 0, 0] : f32 from vector<1x1x1xf32>
    %54 = vector.broadcast %53 : f32 to vector<1x1xf32>
    %cst_16 = arith.constant 2.000000e+00 : f32
    %55 = vector.broadcast %cst_16 : f32 to vector<1x1xf32>
    %56 = arith.mulf %55, %43 : vector<1x1xf32>
    %57 = arith.divf %54, %56 : vector<1x1xf32>
    %cst_17 = arith.constant 5.000000e-01 : f32
    %58 = vector.broadcast %cst_17 : f32 to vector<1x128xf32>
    %59 = arith.mulf %58, %34 : vector<1x128xf32>
    %60 = arith.subf %33, %59 : vector<1x128xf32>
    %cst_18 = arith.constant 5.000000e-01 : f32
    %61 = vector.broadcast %cst_18 : f32 to vector<1x128xf32>
    %62 = arith.mulf %61, %34 : vector<1x128xf32>
    %63 = arith.addf %33, %62 : vector<1x128xf32>
    %cst_19 = arith.constant 5.000000e-01 : f32
    %64 = vector.broadcast %cst_19 : f32 to vector<1x128xf32>
    %65 = arith.mulf %64, %36 : vector<1x128xf32>
    %66 = arith.subf %35, %65 : vector<1x128xf32>
    %cst_20 = arith.constant 5.000000e-01 : f32
    %67 = vector.broadcast %cst_20 : f32 to vector<1x128xf32>
    %68 = arith.mulf %67, %36 : vector<1x128xf32>
    %69 = arith.addf %35, %68 : vector<1x128xf32>
    %70 = arith.minimumf %63, %69 : vector<1x128xf32>
    %71 = arith.maximumf %60, %66 : vector<1x128xf32>
    %72 = arith.subf %70, %71 : vector<1x128xf32>
    %cst_21 = arith.constant 0.000000e+00 : f32
    %73 = vector.broadcast %cst_21 : f32 to vector<1x128xf32>
    %74 = arith.maximumf %72, %73 : vector<1x128xf32>
    %75 = arith.subf %63, %60 : vector<1x128xf32>
    %76 = arith.subf %69, %66 : vector<1x128xf32>
    %77 = arith.addf %75, %76 : vector<1x128xf32>
    %78 = arith.subf %77, %74 : vector<1x128xf32>
    %cst_22 = arith.constant 9.99999997E-7 : f32
    %79 = vector.broadcast %cst_22 : f32 to vector<1x128xf32>
    %80 = arith.maximumf %78, %79 : vector<1x128xf32>
    %81 = arith.divf %74, %80 : vector<1x128xf32>
    %82 = arith.maximumf %63, %69 : vector<1x128xf32>
    %83 = arith.minimumf %60, %66 : vector<1x128xf32>
    %84 = arith.subf %82, %83 : vector<1x128xf32>
    %85 = arith.subf %84, %78 : vector<1x128xf32>
    %cst_23 = arith.constant 9.99999997E-7 : f32
    %86 = vector.broadcast %cst_23 : f32 to vector<1x128xf32>
    %87 = arith.maximumf %84, %86 : vector<1x128xf32>
    %88 = arith.divf %85, %87 : vector<1x128xf32>
    %89 = arith.subf %81, %88 : vector<1x128xf32>
    %cst_24 = arith.constant 1.000000e+00 : f32
    %90 = vector.broadcast %cst_24 : f32 to vector<1x128xf32>
    %91 = arith.subf %90, %89 : vector<1x128xf32>
    %92 = arith.mulf %3, %91 : vector<1x128xf32>
    %93 = vector.shape_cast %92 : vector<1x128xf32> to vector<1x1x128xf32>
    %cst_25 = arith.constant dense<0.000000e+00> : vector<1xf32>
    %94 = vector.multi_reduction <add>, %93, %cst_25 [1, 2] : vector<1x1x128xf32> to vector<1xf32>
    %95 = vector.shape_cast %94 : vector<1xf32> to vector<1x1x1xf32>
    %96 = vector.extract %95[0, 0, 0] : f32 from vector<1x1x1xf32>
    %97 = vector.broadcast %96 : f32 to vector<1x1xf32>
    %98 = arith.divf %97, %43 : vector<1x1xf32>
    %c7 = arith.constant 7 : index
    %c0_26 = arith.constant 0 : index
    %99 = vector.load %arg0[%c7, %c0_26] : memref<80x128xf32, #tpu.memory_space<vmem>>, vector<1x128xf32>
    %c8 = arith.constant 8 : index
    %c0_27 = arith.constant 0 : index
    %100 = vector.load %arg0[%c8, %c0_27] : memref<80x128xf32, #tpu.memory_space<vmem>>, vector<1x128xf32>
    %c9 = arith.constant 9 : index
    %c0_28 = arith.constant 0 : index
    %101 = vector.load %arg0[%c9, %c0_28] : memref<80x128xf32, #tpu.memory_space<vmem>>, vector<1x128xf32>
    %c10 = arith.constant 10 : index
    %c0_29 = arith.constant 0 : index
    %102 = vector.load %arg0[%c10, %c0_29] : memref<80x128xf32, #tpu.memory_space<vmem>>, vector<1x128xf32>
    %c11 = arith.constant 11 : index
    %c0_30 = arith.constant 0 : index
    %103 = vector.load %arg0[%c11, %c0_30] : memref<80x128xf32, #tpu.memory_space<vmem>>, vector<1x128xf32>
    %104 = vector.shape_cast %103 : vector<1x128xf32> to vector<1x1x128xf32>
    %cst_31 = arith.constant dense<0.000000e+00> : vector<1xf32>
    %105 = vector.multi_reduction <add>, %104, %cst_31 [1, 2] : vector<1x1x128xf32> to vector<1xf32>
    %106 = vector.shape_cast %105 : vector<1xf32> to vector<1x1x1xf32>
    %107 = vector.extract %106[0, 0, 0] : f32 from vector<1x1x1xf32>
    %108 = vector.broadcast %107 : f32 to vector<1x1xf32>
    %cst_32 = arith.constant 1.000000e+00 : f32
    %109 = vector.broadcast %cst_32 : f32 to vector<1x1xf32>
    %110 = arith.maximumf %108, %109 : vector<1x1xf32>
    %111 = arith.subf %99, %101 : vector<1x128xf32>
    %112 = math.absf %111 : vector<1x128xf32>
    %113 = arith.subf %100, %102 : vector<1x128xf32>
    %114 = math.absf %113 : vector<1x128xf32>
    %115 = arith.addf %112, %114 : vector<1x128xf32>
    %116 = arith.mulf %103, %115 : vector<1x128xf32>
    %117 = vector.shape_cast %116 : vector<1x128xf32> to vector<1x1x128xf32>
    %cst_33 = arith.constant dense<0.000000e+00> : vector<1xf32>
    %118 = vector.multi_reduction <add>, %117, %cst_33 [1, 2] : vector<1x1x128xf32> to vector<1xf32>
    %119 = vector.shape_cast %118 : vector<1xf32> to vector<1x1x1xf32>
    %120 = vector.extract %119[0, 0, 0] : f32 from vector<1x1x1xf32>
    %121 = vector.broadcast %120 : f32 to vector<1x1xf32>
    %cst_34 = arith.constant 2.000000e+00 : f32
    %122 = vector.broadcast %cst_34 : f32 to vector<1x1xf32>
    %123 = arith.mulf %122, %110 : vector<1x1xf32>
    %124 = arith.divf %121, %123 : vector<1x1xf32>
    %cst_35 = arith.constant 5.000000e-01 : f32
    %125 = vector.broadcast %cst_35 : f32 to vector<1x128xf32>
    %126 = arith.mulf %125, %100 : vector<1x128xf32>
    %127 = arith.subf %99, %126 : vector<1x128xf32>
    %cst_36 = arith.constant 5.000000e-01 : f32
    %128 = vector.broadcast %cst_36 : f32 to vector<1x128xf32>
    %129 = arith.mulf %128, %100 : vector<1x128xf32>
    %130 = arith.addf %99, %129 : vector<1x128xf32>
    %cst_37 = arith.constant 5.000000e-01 : f32
    %131 = vector.broadcast %cst_37 : f32 to vector<1x128xf32>
    %132 = arith.mulf %131, %102 : vector<1x128xf32>
    %133 = arith.subf %101, %132 : vector<1x128xf32>
    %cst_38 = arith.constant 5.000000e-01 : f32
    %134 = vector.broadcast %cst_38 : f32 to vector<1x128xf32>
    %135 = arith.mulf %134, %102 : vector<1x128xf32>
    %136 = arith.addf %101, %135 : vector<1x128xf32>
    %137 = arith.minimumf %130, %136 : vector<1x128xf32>
    %138 = arith.maximumf %127, %133 : vector<1x128xf32>
    %139 = arith.subf %137, %138 : vector<1x128xf32>
    %cst_39 = arith.constant 0.000000e+00 : f32
    %140 = vector.broadcast %cst_39 : f32 to vector<1x128xf32>
    %141 = arith.maximumf %139, %140 : vector<1x128xf32>
    %142 = arith.subf %130, %127 : vector<1x128xf32>
    %143 = arith.subf %136, %133 : vector<1x128xf32>
    %144 = arith.addf %142, %143 : vector<1x128xf32>
    %145 = arith.subf %144, %141 : vector<1x128xf32>
    %cst_40 = arith.constant 9.99999997E-7 : f32
    %146 = vector.broadcast %cst_40 : f32 to vector<1x128xf32>
    %147 = arith.maximumf %145, %146 : vector<1x128xf32>
    %148 = arith.divf %141, %147 : vector<1x128xf32>
    %149 = arith.maximumf %130, %136 : vector<1x128xf32>
    %150 = arith.minimumf %127, %133 : vector<1x128xf32>
    %151 = arith.subf %149, %150 : vector<1x128xf32>
    %152 = arith.subf %151, %145 : vector<1x128xf32>
    %cst_41 = arith.constant 9.99999997E-7 : f32
    %153 = vector.broadcast %cst_41 : f32 to vector<1x128xf32>
    %154 = arith.maximumf %151, %153 : vector<1x128xf32>
    %155 = arith.divf %152, %154 : vector<1x128xf32>
    %156 = arith.subf %148, %155 : vector<1x128xf32>
    %cst_42 = arith.constant 1.000000e+00 : f32
    %157 = vector.broadcast %cst_42 : f32 to vector<1x128xf32>
    %158 = arith.subf %157, %156 : vector<1x128xf32>
    %159 = arith.mulf %103, %158 : vector<1x128xf32>
    %160 = vector.shape_cast %159 : vector<1x128xf32> to vector<1x1x128xf32>
    %cst_43 = arith.constant dense<0.000000e+00> : vector<1xf32>
    %161 = vector.multi_reduction <add>, %160, %cst_43 [1, 2] : vector<1x1x128xf32> to vector<1xf32>
    %162 = vector.shape_cast %161 : vector<1xf32> to vector<1x1x1xf32>
    %163 = vector.extract %162[0, 0, 0] : f32 from vector<1x1x1xf32>
    %164 = vector.broadcast %163 : f32 to vector<1x1xf32>
    %165 = arith.divf %164, %110 : vector<1x1xf32>
    %c12 = arith.constant 12 : index
    %c0_44 = arith.constant 0 : index
    %166 = vector.load %arg0[%c12, %c0_44] : memref<80x128xf32, #tpu.memory_space<vmem>>, vector<1x128xf32>
    %c13 = arith.constant 13 : index
    %c0_45 = arith.constant 0 : index
    %167 = vector.load %arg0[%c13, %c0_45] : memref<80x128xf32, #tpu.memory_space<vmem>>, vector<1x128xf32>
    %c14 = arith.constant 14 : index
    %c0_46 = arith.constant 0 : index
    %168 = vector.load %arg0[%c14, %c0_46] : memref<80x128xf32, #tpu.memory_space<vmem>>, vector<1x128xf32>
    %cst_47 = arith.constant 1.000000e+00 : f32
    %169 = vector.broadcast %cst_47 : f32 to vector<1x128xf32>
    %170 = arith.addf %169, %167 : vector<1x128xf32>
    %171 = arith.subf %170, %166 : vector<1x128xf32>
    %cst_48 = arith.constant 0.000000e+00 : f32
    %172 = vector.broadcast %cst_48 : f32 to vector<1x128xf32>
    %173 = arith.maximumf %171, %172 : vector<1x128xf32>
    %174 = arith.mulf %168, %173 : vector<1x128xf32>
    %175 = vector.shape_cast %168 : vector<1x128xf32> to vector<1x1x128xf32>
    %cst_49 = arith.constant dense<0.000000e+00> : vector<1xf32>
    %176 = vector.multi_reduction <add>, %175, %cst_49 [1, 2] : vector<1x1x128xf32> to vector<1xf32>
    %177 = vector.shape_cast %176 : vector<1xf32> to vector<1x1x1xf32>
    %178 = vector.extract %177[0, 0, 0] : f32 from vector<1x1x1xf32>
    %179 = vector.broadcast %178 : f32 to vector<1x1xf32>
    %cst_50 = arith.constant 1.000000e+00 : f32
    %180 = vector.broadcast %cst_50 : f32 to vector<1x1xf32>
    %181 = arith.maximumf %179, %180 : vector<1x1xf32>
    %182 = vector.shape_cast %174 : vector<1x128xf32> to vector<1x1x128xf32>
    %cst_51 = arith.constant dense<0.000000e+00> : vector<1xf32>
    %183 = vector.multi_reduction <add>, %182, %cst_51 [1, 2] : vector<1x1x128xf32> to vector<1xf32>
    %184 = vector.shape_cast %183 : vector<1xf32> to vector<1x1x1xf32>
    %185 = vector.extract %184[0, 0, 0] : f32 from vector<1x1x1xf32>
    %186 = vector.broadcast %185 : f32 to vector<1x1xf32>
    %cst_52 = arith.constant 2.000000e+00 : f32
    %187 = vector.broadcast %cst_52 : f32 to vector<1x1xf32>
    %188 = arith.mulf %186, %187 : vector<1x1xf32>
    %189 = arith.divf %188, %181 : vector<1x1xf32>
    %c16 = arith.constant 16 : index
    %c0_53 = arith.constant 0 : index
    %190 = vector.load %arg0[%c16, %c0_53] : memref<80x128xf32, #tpu.memory_space<vmem>>, vector<32x128xf32>
    %c48 = arith.constant 48 : index
    %c0_54 = arith.constant 0 : index
    %191 = vector.load %arg0[%c48, %c0_54] : memref<80x128xf32, #tpu.memory_space<vmem>>, vector<32x128xf32>
    %192 = arith.mulf %190, %191 : vector<32x128xf32>
    %cst_55 = arith.constant dense<0.000000e+00> : vector<128xf32>
    %193 = vector.multi_reduction <add>, %192, %cst_55 [0] : vector<32x128xf32> to vector<128xf32>
    %194 = vector.shape_cast %193 : vector<128xf32> to vector<1x128xf32>
    %cst_56 = arith.constant 14.2857141 : f32
    %195 = vector.broadcast %cst_56 : f32 to vector<1x128xf32>
    %196 = arith.mulf %194, %195 : vector<1x128xf32>
    %cst_57 = arith.constant 0.000000e+00 : f32
    %197 = vector.broadcast %cst_57 : f32 to vector<1x1xf32>
    %c0_i32 = arith.constant 0 : i32
    %198 = vector.broadcast %c0_i32 : i32 to vector<1x128xi32>
    %199 = arith.cmpi sge, %0, %198 : vector<1x128xi32>
    %c8_i32 = arith.constant 8 : i32
    %200 = vector.broadcast %c8_i32 : i32 to vector<1x128xi32>
    %201 = arith.cmpi slt, %0, %200 : vector<1x128xi32>
    %202 = arith.andi %199, %201 : vector<1x128xi1>
    %cst_58 = arith.constant -1.000000e+30 : f32
    %203 = vector.broadcast %cst_58 : f32 to vector<1x128xf32>
    %204 = arith.select %202, %196, %203 : vector<1x128xi1>, vector<1x128xf32>
    %205 = vector.shape_cast %204 : vector<1x128xf32> to vector<1x1x128xf32>
    %cst_59 = arith.constant dense<0xFF800000> : vector<1xf32>
    %206 = vector.multi_reduction <maximumf>, %205, %cst_59 [1, 2] : vector<1x1x128xf32> to vector<1xf32>
    %207 = vector.shape_cast %206 : vector<1xf32> to vector<1x1x1xf32>
    %208 = vector.extract %207[0, 0, 0] : f32 from vector<1x1x1xf32>
    %209 = vector.broadcast %208 : f32 to vector<1x1xf32>
    %210 = vector.broadcast %209 : vector<1x1xf32> to vector<1x128xf32>
    %211 = arith.subf %196, %210 : vector<1x128xf32>
    %212 = math.exp %211 : vector<1x128xf32>
    %cst_60 = arith.constant 0.000000e+00 : f32
    %213 = vector.broadcast %cst_60 : f32 to vector<1x128xf32>
    %214 = arith.select %202, %212, %213 : vector<1x128xi1>, vector<1x128xf32>
    %215 = vector.shape_cast %214 : vector<1x128xf32> to vector<1x1x128xf32>
    %cst_61 = arith.constant dense<0.000000e+00> : vector<1xf32>
    %216 = vector.multi_reduction <add>, %215, %cst_61 [1, 2] : vector<1x1x128xf32> to vector<1xf32>
    %217 = vector.shape_cast %216 : vector<1xf32> to vector<1x1x1xf32>
    %218 = vector.extract %217[0, 0, 0] : f32 from vector<1x1x1xf32>
    %219 = vector.broadcast %218 : f32 to vector<1x1xf32>
    %220 = math.log %219 : vector<1x1xf32>
    %221 = arith.addf %220, %209 : vector<1x1xf32>
    %222 = arith.mulf %196, %3 : vector<1x128xf32>
    %cst_62 = arith.constant 0.000000e+00 : f32
    %223 = vector.broadcast %cst_62 : f32 to vector<1x128xf32>
    %224 = arith.select %202, %222, %223 : vector<1x128xi1>, vector<1x128xf32>
    %225 = vector.shape_cast %224 : vector<1x128xf32> to vector<1x1x128xf32>
    %cst_63 = arith.constant dense<0.000000e+00> : vector<1xf32>
    %226 = vector.multi_reduction <add>, %225, %cst_63 [1, 2] : vector<1x1x128xf32> to vector<1xf32>
    %227 = vector.shape_cast %226 : vector<1xf32> to vector<1x1x1xf32>
    %228 = vector.extract %227[0, 0, 0] : f32 from vector<1x1x1xf32>
    %229 = vector.broadcast %228 : f32 to vector<1x1xf32>
    %cst_64 = arith.constant 0.000000e+00 : f32
    %230 = vector.broadcast %cst_64 : f32 to vector<1x128xf32>
    %231 = arith.select %202, %3, %230 : vector<1x128xi1>, vector<1x128xf32>
    %232 = vector.shape_cast %231 : vector<1x128xf32> to vector<1x1x128xf32>
    %cst_65 = arith.constant dense<0.000000e+00> : vector<1xf32>
    %233 = vector.multi_reduction <add>, %232, %cst_65 [1, 2] : vector<1x1x128xf32> to vector<1xf32>
    %234 = vector.shape_cast %233 : vector<1xf32> to vector<1x1x1xf32>
    %235 = vector.extract %234[0, 0, 0] : f32 from vector<1x1x1xf32>
    %236 = vector.broadcast %235 : f32 to vector<1x1xf32>
    %cst_66 = arith.constant 1.000000e+00 : f32
    %237 = vector.broadcast %cst_66 : f32 to vector<1x1xf32>
    %238 = arith.maximumf %236, %237 : vector<1x1xf32>
    %239 = arith.divf %229, %238 : vector<1x1xf32>
    %240 = arith.subf %221, %239 : vector<1x1xf32>
    %241 = arith.addf %197, %240 : vector<1x1xf32>
    %c8_i32_67 = arith.constant 8 : i32
    %242 = vector.broadcast %c8_i32_67 : i32 to vector<1x128xi32>
    %243 = arith.cmpi sge, %0, %242 : vector<1x128xi32>
    %c16_i32_68 = arith.constant 16 : i32
    %244 = vector.broadcast %c16_i32_68 : i32 to vector<1x128xi32>
    %245 = arith.cmpi slt, %0, %244 : vector<1x128xi32>
    %246 = arith.andi %243, %245 : vector<1x128xi1>
    %cst_69 = arith.constant -1.000000e+30 : f32
    %247 = vector.broadcast %cst_69 : f32 to vector<1x128xf32>
    %248 = arith.select %246, %196, %247 : vector<1x128xi1>, vector<1x128xf32>
    %249 = vector.shape_cast %248 : vector<1x128xf32> to vector<1x1x128xf32>
    %cst_70 = arith.constant dense<0xFF800000> : vector<1xf32>
    %250 = vector.multi_reduction <maximumf>, %249, %cst_70 [1, 2] : vector<1x1x128xf32> to vector<1xf32>
    %251 = vector.shape_cast %250 : vector<1xf32> to vector<1x1x1xf32>
    %252 = vector.extract %251[0, 0, 0] : f32 from vector<1x1x1xf32>
    %253 = vector.broadcast %252 : f32 to vector<1x1xf32>
    %254 = vector.broadcast %253 : vector<1x1xf32> to vector<1x128xf32>
    %255 = arith.subf %196, %254 : vector<1x128xf32>
    %256 = math.exp %255 : vector<1x128xf32>
    %cst_71 = arith.constant 0.000000e+00 : f32
    %257 = vector.broadcast %cst_71 : f32 to vector<1x128xf32>
    %258 = arith.select %246, %256, %257 : vector<1x128xi1>, vector<1x128xf32>
    %259 = vector.shape_cast %258 : vector<1x128xf32> to vector<1x1x128xf32>
    %cst_72 = arith.constant dense<0.000000e+00> : vector<1xf32>
    %260 = vector.multi_reduction <add>, %259, %cst_72 [1, 2] : vector<1x1x128xf32> to vector<1xf32>
    %261 = vector.shape_cast %260 : vector<1xf32> to vector<1x1x1xf32>
    %262 = vector.extract %261[0, 0, 0] : f32 from vector<1x1x1xf32>
    %263 = vector.broadcast %262 : f32 to vector<1x1xf32>
    %264 = math.log %263 : vector<1x1xf32>
    %265 = arith.addf %264, %253 : vector<1x1xf32>
    %266 = arith.mulf %196, %3 : vector<1x128xf32>
    %cst_73 = arith.constant 0.000000e+00 : f32
    %267 = vector.broadcast %cst_73 : f32 to vector<1x128xf32>
    %268 = arith.select %246, %266, %267 : vector<1x128xi1>, vector<1x128xf32>
    %269 = vector.shape_cast %268 : vector<1x128xf32> to vector<1x1x128xf32>
    %cst_74 = arith.constant dense<0.000000e+00> : vector<1xf32>
    %270 = vector.multi_reduction <add>, %269, %cst_74 [1, 2] : vector<1x1x128xf32> to vector<1xf32>
    %271 = vector.shape_cast %270 : vector<1xf32> to vector<1x1x1xf32>
    %272 = vector.extract %271[0, 0, 0] : f32 from vector<1x1x1xf32>
    %273 = vector.broadcast %272 : f32 to vector<1x1xf32>
    %cst_75 = arith.constant 0.000000e+00 : f32
    %274 = vector.broadcast %cst_75 : f32 to vector<1x128xf32>
    %275 = arith.select %246, %3, %274 : vector<1x128xi1>, vector<1x128xf32>
    %276 = vector.shape_cast %275 : vector<1x128xf32> to vector<1x1x128xf32>
    %cst_76 = arith.constant dense<0.000000e+00> : vector<1xf32>
    %277 = vector.multi_reduction <add>, %276, %cst_76 [1, 2] : vector<1x1x128xf32> to vector<1xf32>
    %278 = vector.shape_cast %277 : vector<1xf32> to vector<1x1x1xf32>
    %279 = vector.extract %278[0, 0, 0] : f32 from vector<1x1x1xf32>
    %280 = vector.broadcast %279 : f32 to vector<1x1xf32>
    %cst_77 = arith.constant 1.000000e+00 : f32
    %281 = vector.broadcast %cst_77 : f32 to vector<1x1xf32>
    %282 = arith.maximumf %280, %281 : vector<1x1xf32>
    %283 = arith.divf %273, %282 : vector<1x1xf32>
    %284 = arith.subf %265, %283 : vector<1x1xf32>
    %285 = arith.addf %241, %284 : vector<1x1xf32>
    %cst_78 = arith.constant 5.000000e-01 : f32
    %286 = vector.broadcast %cst_78 : f32 to vector<1x1xf32>
    %287 = arith.mulf %285, %286 : vector<1x1xf32>
    %cst_79 = arith.constant 0.000000e+00 : f32
    %288 = vector.broadcast %cst_79 : f32 to vector<1x128xf32>
    %c0_i32_80 = arith.constant 0 : i32
    %289 = vector.broadcast %c0_i32_80 : i32 to vector<1x128xi32>
    %290 = arith.cmpi eq, %0, %289 : vector<1x128xi32>
    %cst_81 = arith.constant 0.000000e+00 : f32
    %291 = vector.shape_cast %57 : vector<1x1xf32> to vector<1x1xf32>
    %292 = vector.broadcast %291 : vector<1x1xf32> to vector<1x128xf32>
    %293 = vector.broadcast %cst_81 : f32 to vector<1x128xf32>
    %294 = arith.select %290, %292, %293 : vector<1x128xi1>, vector<1x128xf32>
    %295 = arith.addf %288, %294 : vector<1x128xf32>
    %c1_i32 = arith.constant 1 : i32
    %296 = vector.broadcast %c1_i32 : i32 to vector<1x128xi32>
    %297 = arith.cmpi eq, %0, %296 : vector<1x128xi32>
    %cst_82 = arith.constant 0.000000e+00 : f32
    %298 = vector.shape_cast %98 : vector<1x1xf32> to vector<1x1xf32>
    %299 = vector.broadcast %298 : vector<1x1xf32> to vector<1x128xf32>
    %300 = vector.broadcast %cst_82 : f32 to vector<1x128xf32>
    %301 = arith.select %297, %299, %300 : vector<1x128xi1>, vector<1x128xf32>
    %302 = arith.addf %295, %301 : vector<1x128xf32>
    %c2_i32 = arith.constant 2 : i32
    %303 = vector.broadcast %c2_i32 : i32 to vector<1x128xi32>
    %304 = arith.cmpi eq, %0, %303 : vector<1x128xi32>
    %cst_83 = arith.constant 0.000000e+00 : f32
    %305 = vector.shape_cast %32 : vector<1x1xf32> to vector<1x1xf32>
    %306 = vector.broadcast %305 : vector<1x1xf32> to vector<1x128xf32>
    %307 = vector.broadcast %cst_83 : f32 to vector<1x128xf32>
    %308 = arith.select %304, %306, %307 : vector<1x128xi1>, vector<1x128xf32>
    %309 = arith.addf %302, %308 : vector<1x128xf32>
    %c3_i32 = arith.constant 3 : i32
    %310 = vector.broadcast %c3_i32 : i32 to vector<1x128xi32>
    %311 = arith.cmpi eq, %0, %310 : vector<1x128xi32>
    %cst_84 = arith.constant 0.000000e+00 : f32
    %312 = vector.shape_cast %189 : vector<1x1xf32> to vector<1x1xf32>
    %313 = vector.broadcast %312 : vector<1x1xf32> to vector<1x128xf32>
    %314 = vector.broadcast %cst_84 : f32 to vector<1x128xf32>
    %315 = arith.select %311, %313, %314 : vector<1x128xi1>, vector<1x128xf32>
    %316 = arith.addf %309, %315 : vector<1x128xf32>
    %c4_i32 = arith.constant 4 : i32
    %317 = vector.broadcast %c4_i32 : i32 to vector<1x128xi32>
    %318 = arith.cmpi eq, %0, %317 : vector<1x128xi32>
    %cst_85 = arith.constant 0.000000e+00 : f32
    %319 = vector.shape_cast %287 : vector<1x1xf32> to vector<1x1xf32>
    %320 = vector.broadcast %319 : vector<1x1xf32> to vector<1x128xf32>
    %321 = vector.broadcast %cst_85 : f32 to vector<1x128xf32>
    %322 = arith.select %318, %320, %321 : vector<1x128xi1>, vector<1x128xf32>
    %323 = arith.addf %316, %322 : vector<1x128xf32>
    %c5_i32 = arith.constant 5 : i32
    %324 = vector.broadcast %c5_i32 : i32 to vector<1x128xi32>
    %325 = arith.cmpi eq, %0, %324 : vector<1x128xi32>
    %cst_86 = arith.constant 0.000000e+00 : f32
    %326 = vector.shape_cast %124 : vector<1x1xf32> to vector<1x1xf32>
    %327 = vector.broadcast %326 : vector<1x1xf32> to vector<1x128xf32>
    %328 = vector.broadcast %cst_86 : f32 to vector<1x128xf32>
    %329 = arith.select %325, %327, %328 : vector<1x128xi1>, vector<1x128xf32>
    %330 = arith.addf %323, %329 : vector<1x128xf32>
    %c6_i32 = arith.constant 6 : i32
    %331 = vector.broadcast %c6_i32 : i32 to vector<1x128xi32>
    %332 = arith.cmpi eq, %0, %331 : vector<1x128xi32>
    %cst_87 = arith.constant 0.000000e+00 : f32
    %333 = vector.shape_cast %165 : vector<1x1xf32> to vector<1x1xf32>
    %334 = vector.broadcast %333 : vector<1x1xf32> to vector<1x128xf32>
    %335 = vector.broadcast %cst_87 : f32 to vector<1x128xf32>
    %336 = arith.select %332, %334, %335 : vector<1x128xi1>, vector<1x128xf32>
    %337 = arith.addf %330, %336 : vector<1x128xf32>
    %c0_88 = arith.constant 0 : index
    %c0_89 = arith.constant 0 : index
    %338 = vector.load %arg1[%c0_88, %c0_89] : memref<1x128xf32, #tpu.memory_space<vmem>>, vector<1x128xf32>
    tpu.vector_store %arg1[%c0_88, %c0_89], %337 {strides = array<i32>} : memref<1x128xf32, #tpu.memory_space<vmem>>, vector<1x128xf32>,
    return
  }
}

</mosaic_0001>

<llo_original>
// kernel: _forward_core.1
$region0: #{_forward_core.1}
  #allocation0 [shape = 'u32[]', space=smem, size = 0x4, offset = 0x4, fixed_abs, tag = 'smem constant byte address 0x4 - core index']
  #allocation1 [shape = 'u32[144,128]{1,0:T(1,128)}', space=vmem, size = 0x12000, scoped, tag = 'internal scratch']
  %s0 = inlined_call_operand.vmem [shape: f32[80,128], index: 0, kind: input, shape index: {}]
  %s1 = inlined_call_operand.vmem [shape: f32[1,128], index: 1, kind: output, shape index: {}]
  %s2 = sld [smem:[#allocation0]]
  $region14: #{_forward_core.1} parent=0
    _
  %s4 = ssub.s32 1, %s2
  %s5 = scalar_select 0, %s4, %s2
  // Predicated region
  $region2: #{_forward_core.1} parent=0 // pred_check
    _
  $region3: #{_forward_core.1} parent=0 // pred_check_branch
    %7 = sbr.rel (0) target = $region5
  $region4: #{_forward_core.1} parent=0 // pred_region
    _
  $region5: #{_forward_core.1} parent=0 // pred_fallthru
    _
  %v8 = vlaneseq
  %v9 = vand.u32 %v8, 127
  %v10 = vld [vmem:[%s0] sm:$0x1]
  %v11 = vld [vmem:[%s0 + $0x1] sm:$0x1]
  %v12 = vld [vmem:[%s0 + $0x2] sm:$0x1]
  %vm13 = vcmp.lt.s32.totalorder %v9, 16
  %v14 = vmax.f32 %v10, %v11
  %v15 = vsub.f32 %v10, %v14
  %v16 = vmul.f32 %v15, 1.442695
  %v17 = vpow.pop %v16
  %v18 = vsub.f32 %v11, %v14
  %v19 = vmul.f32 %v18, 1.442695
  %v20 = vpow.pop %v19
  %v21 = vadd.f32 %v17, %v20
  %v22 = vlog2.pop %v21
  %v23 = vmul.f32 %v22, 0.6931472
  %v24 = vadd.f32 %v23, %v14
  %vm25 = vcmp.gt.f32.partialorder %v12, 0.5
  %v26 = vsel %vm25, %v10, %v11
  %v27 = vsel %vm25, 1.0, 0.1
  %v28 = vsub.f32 %v24, %v26
  %v29 = vmul.f32 %v27, %v28
  %v30 = vsel %vm13, %v29, 0.0
  %vm31 = vcmask 1040384
  %v32 = vsel %vm31, %v30, 0.0
  %33 = vadd.xlane.f32.xlu0 %v32
  %v34 = vpop.xlane.xlu0 %33
  %v35 = vrot.slane %v34, 4
  %v36 = vadd.f32 %v34, %v35
  %v37 = vrot.slane %v36, 2
  %v38 = vadd.f32 %v36, %v37
  %v39 = vrot.slane %v38, 1
  %v40 = vadd.f32 %v38, %v39
  %s41 = vtos %v40
  %v42 = vstv %s41
  %v43 = vmul.f32 %v42, 0.0625
  %v44 = vld [vmem:[%s0 + $0x3] sm:$0x1]
  %v45 = vld [vmem:[%s0 + $0x4] sm:$0x1]
  %v46 = vld [vmem:[%s0 + $0x5] sm:$0x1]
  %v47 = vld [vmem:[%s0 + $0x6] sm:$0x1]
  %v48 = vsel %vm31, %v12, 0.0
  %49 = vadd.xlane.f32.xlu0 %v48
  %v50 = vpop.xlane.xlu0 %49
  %v51 = vrot.slane %v50, 4
  %v52 = vadd.f32 %v50, %v51
  %v53 = vrot.slane %v52, 2
  %v54 = vadd.f32 %v52, %v53
  %v55 = vrot.slane %v54, 1
  %v56 = vadd.f32 %v54, %v55
  %s57 = vtos %v56
  %v58 = vstv %s57
  %v59 = vmax.f32 %v58, 1.0
  %v60 = vsub.f32 %v44, %v46
  %v61 = vand.u32 2147483647, %v60
  %v62 = vsub.f32 %v45, %v47
  %v63 = vand.u32 2147483647, %v62
  %v64 = vadd.f32 %v61, %v63
  %v65 = vmul.f32 %v12, %v64
  %v66 = vsel %vm31, %v65, 0.0
  %67 = vadd.xlane.f32.xlu0 %v66
  %v68 = vpop.xlane.xlu0 %67
  %v69 = vrot.slane %v68, 4
  %v70 = vadd.f32 %v68, %v69
  %v71 = vrot.slane %v70, 2
  %v72 = vadd.f32 %v70, %v71
  %v73 = vrot.slane %v72, 1
  %v74 = vadd.f32 %v72, %v73
  %s75 = vtos %v74
  %v76 = vstv %s75
  %v77 = vmul.f32 %v59, 2.0
  %v78 = vrcp.pop %v77
  %v79 = vmul.f32 %v76, %v78
  %v80 = vmul.f32 %v45, 0.5
  %v81 = vsub.f32 %v44, %v80
  %v82 = vadd.f32 %v44, %v80
  %v83 = vmul.f32 %v47, 0.5
  %v84 = vsub.f32 %v46, %v83
  %v85 = vadd.f32 %v46, %v83
  %v86 = vmin.f32 %v82, %v85
  %v87 = vmax.f32 %v81, %v84
  %v88 = vsub.f32 %v86, %v87
  %v89 = vmax.f32 %v88, 0.0
  %v90 = vsub.f32 %v82, %v81
  %v91 = vsub.f32 %v85, %v84
  %v92 = vadd.f32 %v90, %v91
  %v93 = vsub.f32 %v92, %v89
  %v94 = vmax.f32 %v93, 1e-06
  %v95 = vrcp.pop %v94
  %v96 = vmul.f32 %v89, %v95
  %v97 = vmax.f32 %v82, %v85
  %v98 = vmin.f32 %v81, %v84
  %v99 = vsub.f32 %v97, %v98
  %v100 = vsub.f32 %v99, %v93
  %v101 = vmax.f32 %v99, 1e-06
  %v102 = vrcp.pop %v101
  %v103 = vmul.f32 %v100, %v102
  %v104 = vsub.f32 %v96, %v103
  %v105 = vsub.f32 1.0, %v104
  %v106 = vmul.f32 %v12, %v105
  %v107 = vsel %vm31, %v106, 0.0
  %108 = vadd.xlane.f32.xlu0 %v107
  %v109 = vpop.xlane.xlu0 %108
  %v110 = vrot.slane %v109, 4
  %v111 = vadd.f32 %v109, %v110
  %v112 = vrot.slane %v111, 2
  %v113 = vadd.f32 %v111, %v112
  %v114 = vrot.slane %v113, 1
  %v115 = vadd.f32 %v113, %v114
  %s116 = vtos %v115
  %v117 = vstv %s116
  %v118 = vrcp.pop %v59
  %v119 = vmul.f32 %v117, %v118
  %v120 = vld [vmem:[%s0 + $0x7] sm:$0x1]
  %v121 = vld [vmem:[%s0 + $0x8] sm:$0x1]
  %v122 = vld [vmem:[%s0 + $0x9] sm:$0x1]
  %v123 = vld [vmem:[%s0 + $0xa] sm:$0x1]
  %v124 = vld [vmem:[%s0 + $0xb] sm:$0x1]
  %v125 = vsel %vm31, %v124, 0.0
  %126 = vadd.xlane.f32.xlu0 %v125
  %v127 = vpop.xlane.xlu0 %126
  %v128 = vrot.slane %v127, 4
  %v129 = vadd.f32 %v127, %v128
  %v130 = vrot.slane %v129, 2
  %v131 = vadd.f32 %v129, %v130
  %v132 = vrot.slane %v131, 1
  %v133 = vadd.f32 %v131, %v132
  %s134 = vtos %v133
  %v135 = vstv %s134
  %v136 = vmax.f32 %v135, 1.0
  %v137 = vsub.f32 %v120, %v122
  %v138 = vand.u32 2147483647, %v137
  %v139 = vsub.f32 %v121, %v123
  %v140 = vand.u32 2147483647, %v139
  %v141 = vadd.f32 %v138, %v140
  %v142 = vmul.f32 %v124, %v141
  %v143 = vsel %vm31, %v142, 0.0
  %144 = vadd.xlane.f32.xlu0 %v143
  %v145 = vpop.xlane.xlu0 %144
  %v146 = vrot.slane %v145, 4
  %v147 = vadd.f32 %v145, %v146
  %v148 = vrot.slane %v147, 2
  %v149 = vadd.f32 %v147, %v148
  %v150 = vrot.slane %v149, 1
  %v151 = vadd.f32 %v149, %v150
  %s152 = vtos %v151
  %v153 = vstv %s152
  %v154 = vmul.f32 %v136, 2.0
  %v155 = vrcp.pop %v154
  %v156 = vmul.f32 %v153, %v155
  %v157 = vmul.f32 %v121, 0.5
  %v158 = vsub.f32 %v120, %v157
  %v159 = vadd.f32 %v120, %v157
  %v160 = vmul.f32 %v123, 0.5
  %v161 = vsub.f32 %v122, %v160
  %v162 = vadd.f32 %v122, %v160
  %v163 = vmin.f32 %v159, %v162
  %v164 = vmax.f32 %v158, %v161
  %v165 = vsub.f32 %v163, %v164
  %v166 = vmax.f32 %v165, 0.0
  %v167 = vsub.f32 %v159, %v158
  %v168 = vsub.f32 %v162, %v161
  %v169 = vadd.f32 %v167, %v168
  %v170 = vsub.f32 %v169, %v166
  %v171 = vmax.f32 %v170, 1e-06
  %v172 = vrcp.pop %v171
  %v173 = vmul.f32 %v166, %v172
  %v174 = vmax.f32 %v159, %v162
  %v175 = vmin.f32 %v158, %v161
  %v176 = vsub.f32 %v174, %v175
  %v177 = vsub.f32 %v176, %v170
  %v178 = vmax.f32 %v176, 1e-06
  %v179 = vrcp.pop %v178
  %v180 = vmul.f32 %v177, %v179
  %v181 = vsub.f32 %v173, %v180
  %v182 = vsub.f32 1.0, %v181
  %v183 = vmul.f32 %v124, %v182
  %v184 = vsel %vm31, %v183, 0.0
  %185 = vadd.xlane.f32.xlu0 %v184
  %v186 = vpop.xlane.xlu0 %185
  %v187 = vrot.slane %v186, 4
  %v188 = vadd.f32 %v186, %v187
  %v189 = vrot.slane %v188, 2
  %v190 = vadd.f32 %v188, %v189
  %v191 = vrot.slane %v190, 1
  %v192 = vadd.f32 %v190, %v191
  %s193 = vtos %v192
  %v194 = vstv %s193
  %v195 = vrcp.pop %v136
  %v196 = vmul.f32 %v194, %v195
  %v197 = vld [vmem:[%s0 + $0xc] sm:$0x1]
  %v198 = vld [vmem:[%s0 + $0xd] sm:$0x1]
  %v199 = vld [vmem:[%s0 + $0xe] sm:$0x1]
  %v200 = vadd.f32 %v198, 1.0
  %v201 = vsub.f32 %v200, %v197
  %v202 = vmax.f32 %v201, 0.0
  %v203 = vmul.f32 %v199, %v202
  %v204 = vsel %vm31, %v199, 0.0
  %205 = vadd.xlane.f32.xlu0 %v204
  %v206 = vpop.xlane.xlu0 %205
  %v207 = vrot.slane %v206, 4
  %v208 = vadd.f32 %v206, %v207
  %v209 = vrot.slane %v208, 2
  %v210 = vadd.f32 %v208, %v209
  %v211 = vrot.slane %v210, 1
  %v212 = vadd.f32 %v210, %v211
  %s213 = vtos %v212
  %v214 = vstv %s213
  %v215 = vmax.f32 %v214, 1.0
  %v216 = vsel %vm31, %v203, 0.0
  %217 = vadd.xlane.f32.xlu0 %v216
  %v218 = vpop.xlane.xlu0 %217
  %v219 = vrot.slane %v218, 4
  %v220 = vadd.f32 %v218, %v219
  %v221 = vrot.slane %v220, 2
  %v222 = vadd.f32 %v220, %v221
  %v223 = vrot.slane %v222, 1
  %v224 = vadd.f32 %v222, %v223
  %s225 = vtos %v224
  %v226 = vstv %s225
  %v227 = vmul.f32 %v226, 2.0
  %v228 = vrcp.pop %v215
  %v229 = vmul.f32 %v227, %v228
  %v230 = vld [vmem:[%s0 + $0x10] sm:$0xff]
  %v231 = vld [vmem:[%s0 + $0x18] sm:$0xff]
  %v232 = vld [vmem:[%s0 + $0x20] sm:$0xff]
  %v233 = vld [vmem:[%s0 + $0x28] sm:$0xff]
  %v234 = vld [vmem:[%s0 + $0x30] sm:$0xff]
  %v235 = vld [vmem:[%s0 + $0x38] sm:$0xff]
  %v236 = vld [vmem:[%s0 + $0x40] sm:$0xff]
  %v237 = vld [vmem:[%s0 + $0x48] sm:$0xff]
  %v238 = vmul.f32 %v230, %v234
  %v239 = vmul.f32 %v231, %v235
  %v240 = vmul.f32 %v232, %v236
  %v241 = vmul.f32 %v233, %v237
  %v242 = vadd.f32 %v238, %v239
  %v243 = vadd.f32 %v242, %v240
  %v244 = vadd.f32 %v243, %v241
  %v245 = vrot.slane %v244, 4
  %v246 = vadd.f32 %v244, %v245
  %v247 = vrot.slane %v246, 2
  %v248 = vadd.f32 %v246, %v247
  %v249 = vrot.slane %v248, 1
  %v250 = vadd.f32 %v248, %v249
  %v251 = vmul.f32 %v250, 14.285714
  %vm252 = vcmp.ge.s32.totalorder %v9, 0
  %vm253 = vcmp.lt.s32.totalorder %v9, 8
  %vm254 = vmand %vm252, %vm253
  %v255 = vsel %vm254, %v251, -1e+30
  %256 = vmax.xlane.f32.xlu0 %v255
  %v257 = vpop.xlane.xlu0 %256
  %s258 = vtos %v257
  %v259 = vstv %s258
  %v260 = vsub.f32 %v251, %v259
  %v261 = vmul.f32 %v260, 1.442695
  %v262 = vpow.pop %v261
  %v263 = vsel %vm254, %v262, 0.0
  %v264 = vsel %vm31, %v263, 0.0
  %265 = vadd.xlane.f32.xlu0 %v264
  %v266 = vpop.xlane.xlu0 %265
  %v267 = vrot.slane %v266, 4
  %v268 = vadd.f32 %v266, %v267
  %v269 = vrot.slane %v268, 2
  %v270 = vadd.f32 %v268, %v269
  %v271 = vrot.slane %v270, 1
  %v272 = vadd.f32 %v270, %v271
  %s273 = vtos %v272
  %v274 = vstv %s273
  %v275 = vlog2.pop %v274
  %v276 = vmul.f32 %v275, 0.6931472
  %v277 = vadd.f32 %v276, %v259
  %v278 = vmul.f32 %v251, %v12
  %v279 = vsel %vm254, %v278, 0.0
  %v280 = vsel %vm31, %v279, 0.0
  %281 = vadd.xlane.f32.xlu0 %v280
  %v282 = vpop.xlane.xlu0 %281
  %v283 = vrot.slane %v282, 4
  %v284 = vadd.f32 %v282, %v283
  %v285 = vrot.slane %v284, 2
  %v286 = vadd.f32 %v284, %v285
  %v287 = vrot.slane %v286, 1
  %v288 = vadd.f32 %v286, %v287
  %s289 = vtos %v288
  %v290 = vstv %s289
  %v291 = vsel %vm254, %v12, 0.0
  %v292 = vsel %vm31, %v291, 0.0
  %293 = vadd.xlane.f32.xlu0 %v292
  %v294 = vpop.xlane.xlu0 %293
  %v295 = vrot.slane %v294, 4
  %v296 = vadd.f32 %v294, %v295
  %v297 = vrot.slane %v296, 2
  %v298 = vadd.f32 %v296, %v297
  %v299 = vrot.slane %v298, 1
  %v300 = vadd.f32 %v298, %v299
  %s301 = vtos %v300
  %v302 = vstv %s301
  %v303 = vmax.f32 %v302, 1.0
  %v304 = vrcp.pop %v303
  %v305 = vmul.f32 %v290, %v304
  %v306 = vsub.f32 %v277, %v305
  %v307 = vadd.f32 %v306, 0.0
  %vm308 = vcmp.ge.s32.totalorder %v9, 8
  %vm309 = vmand %vm308, %vm13
  %v310 = vsel %vm309, %v251, -1e+30
  %311 = vmax.xlane.f32.xlu0 %v310
  %v312 = vpop.xlane.xlu0 %311
  %s313 = vtos %v312
  %v314 = vstv %s313
  %v315 = vsub.f32 %v251, %v314
  %v316 = vmul.f32 %v315, 1.442695
  %v317 = vpow.pop %v316
  %v318 = vsel %vm309, %v317, 0.0
  %v319 = vsel %vm31, %v318, 0.0
  %320 = vadd.xlane.f32.xlu0 %v319
  %v321 = vpop.xlane.xlu0 %320
  %v322 = vrot.slane %v321, 4
  %v323 = vadd.f32 %v321, %v322
  %v324 = vrot.slane %v323, 2
  %v325 = vadd.f32 %v323, %v324
  %v326 = vrot.slane %v325, 1
  %v327 = vadd.f32 %v325, %v326
  %s328 = vtos %v327
  %v329 = vstv %s328
  %v330 = vlog2.pop %v329
  %v331 = vmul.f32 %v330, 0.6931472
  %v332 = vadd.f32 %v331, %v314
  %v333 = vsel %vm309, %v278, 0.0
  %v334 = vsel %vm31, %v333, 0.0
  %335 = vadd.xlane.f32.xlu0 %v334
  %v336 = vpop.xlane.xlu0 %335
  %v337 = vrot.slane %v336, 4
  %v338 = vadd.f32 %v336, %v337
  %v339 = vrot.slane %v338, 2
  %v340 = vadd.f32 %v338, %v339
  %v341 = vrot.slane %v340, 1
  %v342 = vadd.f32 %v340, %v341
  %s343 = vtos %v342
  %v344 = vstv %s343
  %v345 = vsel %vm309, %v12, 0.0
  %v346 = vsel %vm31, %v345, 0.0
  %347 = vadd.xlane.f32.xlu0 %v346
  %v348 = vpop.xlane.xlu0 %347
  %v349 = vrot.slane %v348, 4
  %v350 = vadd.f32 %v348, %v349
  %v351 = vrot.slane %v350, 2
  %v352 = vadd.f32 %v350, %v351
  %v353 = vrot.slane %v352, 1
  %v354 = vadd.f32 %v352, %v353
  %s355 = vtos %v354
  %v356 = vstv %s355
  %v357 = vmax.f32 %v356, 1.0
  %v358 = vrcp.pop %v357
  %v359 = vmul.f32 %v344, %v358
  %v360 = vsub.f32 %v332, %v359
  %v361 = vadd.f32 %v307, %v360
  %v362 = vmul.f32 %v361, 0.5
  %vm363 = vcmp.eq.s32.totalorder %v9, 0
  %v364 = vsel %vm363, %v79, 0.0
  %v365 = vadd.f32 %v364, 0.0
  %vm366 = vcmp.eq.s32.totalorder %v9, 1
  %v367 = vsel %vm366, %v119, 0.0
  %v368 = vadd.f32 %v365, %v367
  %vm369 = vcmp.eq.s32.totalorder %v9, 2
  %v370 = vsel %vm369, %v43, 0.0
  %v371 = vadd.f32 %v368, %v370
  %vm372 = vcmp.eq.s32.totalorder %v9, 3
  %v373 = vsel %vm372, %v229, 0.0
  %v374 = vadd.f32 %v371, %v373
  %vm375 = vcmp.eq.s32.totalorder %v9, 4
  %v376 = vsel %vm375, %v362, 0.0
  %v377 = vadd.f32 %v374, %v376
  %vm378 = vcmp.eq.s32.totalorder %v9, 5
  %v379 = vsel %vm378, %v156, 0.0
  %v380 = vadd.f32 %v377, %v379
  %vm381 = vcmp.eq.s32.totalorder %v9, 6
  %v382 = vsel %vm381, %v196, 0.0
  %v383 = vadd.f32 %v380, %v382
  %384 = vst [vmem:[%s1] sm:$0x1] %v383
  // Predicated region
  $region6: #{_forward_core.1} parent=0 // pred_check
    _
  $region7: #{_forward_core.1} parent=0 // pred_check_branch
    %386 = sbr.rel (0) target = $region9
  $region8: #{_forward_core.1} parent=0 // pred_region
    _
  $region9: #{_forward_core.1} parent=0 // pred_fallthru
    _
  // Predicated region
  $region10: #{_forward_core.1} parent=0 // pred_check
    _
  $region11: #{_forward_core.1} parent=0 // pred_check_branch
    %388 = sbr.rel (0) target = $region13
  $region12: #{_forward_core.1} parent=0 // pred_region
    _
  $region13: #{_forward_core.1} parent=0 // pred_fallthru
    _

</llo_original>
